<compile_context>
chip_gen: v7x
topology: tpu7x:2x2x1
jax: 0.10.0
libtpu: 0.0.40
codegen_flags: <defaults>
</compile_context>

<pallas_src>
import functools

import jax
import jax.numpy as jnp
from jax.experimental import pallas as pl
from jax.experimental.pallas import tpu as pltpu

_LANE = 128


def _sublane(itemsize):
    # minimum second-to-last tile dim per dtype width (f32:8, bf16:16, int8/fp8:32)
    return {4: 8, 2: 16, 1: 32}.get(itemsize, 8)


def _pick_seq_tile(S, F, D, itemsize, *, set_budget_bytes=14 << 20):
    """Pick the seq-tile row count so ONE set of per-step blocks
    (x block + out block + lane-padded ratio block) is ~set_budget_bytes.
    Double-buffering then lands around 2*set_budget (+ headroom), which fits
    comfortably on v5e/v6e (128 MiB physical) and v7x (64 MiB physical)."""
    sub = _sublane(itemsize)
    if S <= sub:
        return S  # full-extent block trivially satisfies the (8,128) rule
    # Per seq row: x block + same-sized out block + f32 ratio row padded 1->128 lanes.
    per_row = 2 * F * D * itemsize + F * _LANE * 4
    rows = max(sub, set_budget_bytes // per_row)
    ts = max(sub, (rows // sub) * sub)
    if ts >= S:
        return S  # whole sequence fits in one block
    if S % sub == 0:
        # Prefer an exact divisor of S (no ragged last block) if one exists
        # within 2x of the target tile; otherwise cdiv handles the remainder.
        t = ts
        while t > sub and S % t != 0:
            t -= sub
        if S % t == 0 and 2 * t >= ts:
            return t
    return ts


def _sconcat_kernel(ratio_ref, x_ref, o_ref, *, D):
    # ratio_ref: (F, ts, 1)    f32, same seq tile as x (no in-kernel slicing)
    # x_ref    : (F, 1, ts, D) one seq-tile of one batch row, all features
    # o_ref    : (ts, F*D)     lane-dense output tile (torch.cat(dim=2) layout)
    F = x_ref.shape[0]
    # F is a small static constant -> unrolled; each feature writes its own
    # lane slab of the wide output tile.
    for f in range(F):
        r_f = ratio_ref[f]            # (ts, 1) f32, broadcasts over lanes
        xf = x_ref[f, 0]              # (ts, D)
        if o_ref.dtype != jnp.float32:
            # Native-width multiply on bf16/fp8 inputs (v6e/v7x VALU); trims
            # vreg pressure for large tiles. Kernel is DMA-bound either way.
            r_f = r_f.astype(xf.dtype)
        o_ref[:, f * D:(f + 1) * D] = (xf * r_f).astype(o_ref.dtype)


def sconcat(x, ratios, *, seq_tile=None, x_buffers=None):
    """x: (F, B, S, D) stacked features; ratios: (F, S, 1). Returns (B, S, F*D)."""
    F, B, S, D = x.shape
    assert ratios.shape == (F, S, 1), ratios.shape
    ratios = ratios.astype(jnp.float32)
    itemsize = jnp.dtype(x.dtype).itemsize

    ts = seq_tile if seq_tile is not None else _pick_seq_tile(S, F, D, itemsize)
    assert ts == S or ts % _sublane(itemsize) == 0, (ts, S)
    n_s = pl.cdiv(S, ts)  # ragged last block handled by Pallas boundary masking

    # Real per-step VMEM footprint. The ratio block's trailing dim pads
    # 1 -> 128 lanes in VMEM, so it is counted at F*ts*128*4 B, not F*ts*4 B.
    x_blk = F * ts * D * itemsize
    out_blk = ts * F * D * itemsize
    ratio_blk = F * ts * _LANE * 4
    n_x_buf = 2 if x_buffers is None else x_buffers
    footprint = n_x_buf * x_blk + 2 * out_blk + 2 * ratio_blk
    # Explicit scoped-VMEM limit: footprint + headroom, floored at the old
    # default and capped under v7x's 64 MiB physical VMEM.
    vmem_limit = int(min(max(footprint + (4 << 20), 16 << 20), 56 << 20))

    x_spec_kwargs = {}
    if x_buffers is not None and x_buffers != 2:
        # Optional deeper pipelining on x (e.g. 3 on v7x if a profile shows
        # exposed DMA); default double-buffering otherwise.
        x_spec_kwargs["pipeline_mode"] = pl.Buffered(x_buffers)

    kernel = functools.partial(_sconcat_kernel, D=D)

    grid_spec = pltpu.PrefetchScalarGridSpec(
        num_scalar_prefetch=0,
        # Seq-tile axis leads: it is the large/even axis (good megacore split
        # on v7x even for B=1), and the ratio block index is constant across
        # the inner batch loop so its tiny DMA is skipped on consecutive steps.
        grid=(n_s, B),
        in_specs=[
            # Ratios tiled with the same seq index as x: footprint scales with
            # ts instead of S, no full-array lane-padded resident copy.
            pl.BlockSpec((F, ts, 1), lambda s, b: (0, s, 0)),
            # One (F, seq_tile, D) slab per step (batch dim is a size-1 block).
            pl.BlockSpec((F, 1, ts, D), lambda s, b: (0, b, s, 0),
                         **x_spec_kwargs),
        ],
        # Lane-dense (seq_tile, F*D) output tile: wide unmasked writeback.
        out_specs=pl.BlockSpec((None, ts, F * D), lambda s, b: (b, s, 0)),
    )

    # Advisory cost for XLA scheduling around this DMA-bound custom call.
    cost = pl.CostEstimate(
        flops=F * B * S * D,  # one multiply per element
        transcendentals=0,
        bytes_accessed=2 * F * B * S * D * itemsize + F * S * 4,
    )

    return pl.pallas_call(
        kernel,
        out_shape=jax.ShapeDtypeStruct((B, S, F * D), x.dtype),
        grid_spec=grid_spec,
        compiler_params=pltpu.CompilerParams(
            # No reduction axis; both axes independent -> megacore-shardable.
            dimension_semantics=("parallel", "parallel"),
            vmem_limit_bytes=vmem_limit,
        ),
        cost_estimate=cost,
    )(ratios, x)


if __name__ == "__main__":
    # Small shapes consistent with the module: feature_num=3, batch=2,
    # seq_len=64, dim=128. seq_tile=16 exercises the multi-tile grid path;
    # the second call exercises the automatic tile selection.
    F, B, S, D = 3, 2, 64, 128

    key = jax.random.PRNGKey(0)
    kx, kr = jax.random.split(key)
    x = jax.random.normal(kx, (F, B, S, D), dtype=jnp.float32)
    # Module __init__ uses ones; perturb deterministically so the multiply is
    # non-trivial.
    ratios = jnp.ones((F, S, 1), jnp.float32) + 0.1 * jax.random.normal(
        kr, (F, S, 1), dtype=jnp.float32
    )

    # Pure-JAX reference mirroring the PyTorch forward.
    ref = jnp.concatenate([ratios[i] * x[i] for i in range(F)], axis=2)

    out_tiled = jax.block_until_ready(sconcat(x, ratios, seq_tile=16))
    out_auto = jax.block_until_ready(sconcat(x, ratios))

    assert out_tiled.shape == (B, S, F * D)
    assert jnp.allclose(out_tiled, ref, atol=1e-6, rtol=1e-6)
    assert jnp.allclose(out_auto, ref, atol=1e-6, rtol=1e-6)

    print("KERNEL_OK")
</pallas_src>

<mosaic_0001>
module attributes {stable_mosaic.version = 11 : i64} {
  func.func @_sconcat_kernel(%arg0: i32, %arg1: i32, %arg2: memref<3x16x1xf32, #tpu.memory_space<vmem>>, %arg3: memref<3x1x16x128xf32, #tpu.memory_space<vmem>>, %arg4: memref<1x16x384xf32, #tpu.memory_space<vmem>>) attributes {dimension_semantics = [#tpu.dimension_semantics<parallel>, #tpu.dimension_semantics<parallel>], iteration_bounds = array<i64: 4, 2>, scalar_prefetch = 0 : i64, scratch_operands = 0 : i64, tpu.core_type = #tpu.core_type<tc>, window_params = [{transform_indices = @transform_0, window_bounds = array<i64: 3, 16, 1>}, {transform_indices = @transform_1, window_bounds = array<i64: 3, 1, 16, 128>}, {transform_indices = @transform_2, window_bounds = array<i64: 1, 16, 384>}]} {
    %c0 = arith.constant 0 : index
    %c0_0 = arith.constant 0 : index
    %c0_1 = arith.constant 0 : index
    %0 = vector.load %arg2[%c0, %c0_0, %c0_1] : memref<3x16x1xf32, #tpu.memory_space<vmem>>, vector<1x16x1xf32>
    %1 = vector.shape_cast %0 : vector<1x16x1xf32> to vector<16x1xf32>
    %c0_2 = arith.constant 0 : index
    %c0_3 = arith.constant 0 : index
    %c0_4 = arith.constant 0 : index
    %c0_5 = arith.constant 0 : index
    %2 = vector.load %arg3[%c0_2, %c0_3, %c0_4, %c0_5] : memref<3x1x16x128xf32, #tpu.memory_space<vmem>>, vector<1x1x16x128xf32>
    %3 = vector.shape_cast %2 : vector<1x1x16x128xf32> to vector<16x128xf32>
    %4 = vector.broadcast %1 : vector<16x1xf32> to vector<16x128xf32>
    %5 = arith.mulf %3, %4 : vector<16x128xf32>
    %c0_6 = arith.constant 0 : index
    %c0_7 = arith.constant 0 : index
    %c0_8 = arith.constant 0 : index
    %6 = vector.load %arg4[%c0_6, %c0_7, %c0_8] : memref<1x16x384xf32, #tpu.memory_space<vmem>>, vector<1x16x128xf32>
    %7 = vector.shape_cast %6 : vector<1x16x128xf32> to vector<16x128xf32>
    %8 = vector.shape_cast %5 : vector<16x128xf32> to vector<1x16x128xf32>
    tpu.vector_store %arg4[%c0_6, %c0_7, %c0_8], %8 {strides = array<i32>} : memref<1x16x384xf32, #tpu.memory_space<vmem>>, vector<1x16x128xf32>,
    %c1 = arith.constant 1 : index
    %c0_9 = arith.constant 0 : index
    %c0_10 = arith.constant 0 : index
    %9 = vector.load %arg2[%c1, %c0_9, %c0_10] : memref<3x16x1xf32, #tpu.memory_space<vmem>>, vector<1x16x1xf32>
    %10 = vector.shape_cast %9 : vector<1x16x1xf32> to vector<16x1xf32>
    %c1_11 = arith.constant 1 : index
    %c0_12 = arith.constant 0 : index
    %c0_13 = arith.constant 0 : index
    %c0_14 = arith.constant 0 : index
    %11 = vector.load %arg3[%c1_11, %c0_12, %c0_13, %c0_14] : memref<3x1x16x128xf32, #tpu.memory_space<vmem>>, vector<1x1x16x128xf32>
    %12 = vector.shape_cast %11 : vector<1x1x16x128xf32> to vector<16x128xf32>
    %13 = vector.broadcast %10 : vector<16x1xf32> to vector<16x128xf32>
    %14 = arith.mulf %12, %13 : vector<16x128xf32>
    %c0_15 = arith.constant 0 : index
    %c0_16 = arith.constant 0 : index
    %c128 = arith.constant 128 : index
    %15 = vector.load %arg4[%c0_15, %c0_16, %c128] : memref<1x16x384xf32, #tpu.memory_space<vmem>>, vector<1x16x128xf32>
    %16 = vector.shape_cast %15 : vector<1x16x128xf32> to vector<16x128xf32>
    %17 = vector.shape_cast %14 : vector<16x128xf32> to vector<1x16x128xf32>
    tpu.vector_store %arg4[%c0_15, %c0_16, %c128], %17 {strides = array<i32>} : memref<1x16x384xf32, #tpu.memory_space<vmem>>, vector<1x16x128xf32>,
    %c2 = arith.constant 2 : index
    %c0_17 = arith.constant 0 : index
    %c0_18 = arith.constant 0 : index
    %18 = vector.load %arg2[%c2, %c0_17, %c0_18] : memref<3x16x1xf32, #tpu.memory_space<vmem>>, vector<1x16x1xf32>
    %19 = vector.shape_cast %18 : vector<1x16x1xf32> to vector<16x1xf32>
    %c2_19 = arith.constant 2 : index
    %c0_20 = arith.constant 0 : index
    %c0_21 = arith.constant 0 : index
    %c0_22 = arith.constant 0 : index
    %20 = vector.load %arg3[%c2_19, %c0_20, %c0_21, %c0_22] : memref<3x1x16x128xf32, #tpu.memory_space<vmem>>, vector<1x1x16x128xf32>
    %21 = vector.shape_cast %20 : vector<1x1x16x128xf32> to vector<16x128xf32>
    %22 = vector.broadcast %19 : vector<16x1xf32> to vector<16x128xf32>
    %23 = arith.mulf %21, %22 : vector<16x128xf32>
    %c0_23 = arith.constant 0 : index
    %c0_24 = arith.constant 0 : index
    %c256 = arith.constant 256 : index
    %24 = vector.load %arg4[%c0_23, %c0_24, %c256] : memref<1x16x384xf32, #tpu.memory_space<vmem>>, vector<1x16x128xf32>
    %25 = vector.shape_cast %24 : vector<1x16x128xf32> to vector<16x128xf32>
    %26 = vector.shape_cast %23 : vector<16x128xf32> to vector<1x16x128xf32>
    tpu.vector_store %arg4[%c0_23, %c0_24, %c256], %26 {strides = array<i32>} : memref<1x16x384xf32, #tpu.memory_space<vmem>>, vector<1x16x128xf32>,
    return
  }
  func.func @transform_0(%arg0: i32, %arg1: i32) -> (i32, i32, i32) {
    %c0_i32 = arith.constant 0 : i32
    %c0_i32_0 = arith.constant 0 : i32
    %c0_i32_1 = arith.constant 0 : i32
    return %c0_i32, %arg0, %c0_i32_0 : i32, i32, i32
  }
  func.func @transform_1(%arg0: i32, %arg1: i32) -> (i32, i32, i32, i32) {
    %c0_i32 = arith.constant 0 : i32
    %c0_i32_0 = arith.constant 0 : i32
    %c0_i32_1 = arith.constant 0 : i32
    return %c0_i32, %arg1, %arg0, %c0_i32_0 : i32, i32, i32, i32
  }
  func.func @transform_2(%arg0: i32, %arg1: i32) -> (i32, i32, i32) {
    %c0_i32 = arith.constant 0 : i32
    %c0_i32_0 = arith.constant 0 : i32
    return %arg1, %arg0, %c0_i32 : i32, i32, i32
  }
}

</mosaic_0001>

<llo_original>
// kernel: tpu_custom_call.1
$region0: #{tpu_custom_call.1}
  #allocation0 [shape = 'u32[]', space=smem, size = 0x4, offset = 0x4, fixed_abs, tag = 'smem constant byte address 0x4 - core index']
  #allocation1 [shape = 'u32[144,128]{1,0:T(1,128)}', space=vmem, size = 0x12000, scoped, tag = 'internal scratch']
  #allocation7 [shape = 's32[]', space=sflag, size = 0x4, offset = 0, fixed_abs, tag = 'sflag constant byte address 0x0 - dummy sync flag']
  %s0 = inlined_call_operand.vmem [shape: f32[3,64,1], index: 0, kind: input, shape index: {}]
  %s1 = inlined_call_operand.hbm [shape: f32[3,2,64,128], index: 1, kind: input, shape index: {}]
  %s2 = inlined_call_operand.hbm [shape: f32[2,64,384], index: 2, kind: output, shape index: {}]
  %s3 = sld [smem:[#allocation0]]
  $region83: #{tpu_custom_call.1} parent=0
    _
  %s5 = ssub.s32 1, %s3
  %s6 = scalar_select 0, %s5, %s3
  $region1: #{tpu_custom_call.1} parent=0
    #allocation2 [shape = 'u8[49152]{0}', space=vmem, size = 0xc000, scoped, tag = 'input window, operand 0']
    #allocation3 [shape = 'u8[49152]{0}', space=vmem, size = 0xc000, scoped, tag = 'input window, operand 1']
    #allocation4 [shape = 's32[2]{0}', space=sflag, size = 0x8, scoped, tag = 'scoped memory for tpu_custom_call.1']
    #allocation5 [shape = 's32[2]{0}', space=sflag, size = 0x8, scoped, tag = 'scoped memory for tpu_custom_call.1']
    #allocation6 [shape = 'u8[49152]{0}', space=vmem, size = 0xc000, scoped, tag = 'output window, operand 0']
    %7 = vsyncpa [#allocation4], 0
    %s8 = scalar_lea.sflag [#allocation4], 1
    %9 = vsyncpa %s8, 0
    %10 = vsyncpa [#allocation5], 0
    %s11 = scalar_lea.sflag [#allocation5], 1
    %12 = vsyncpa %s11, 0
    loop: start=0, step=1, limit=10
    $region2: #{tpu_custom_call.1} parent=1 // loop_pre_header
      _
    $region3: #{tpu_custom_call.1} parent=1 // loop_header
      %s14 = sphi 0, %s18
      %p15 = scmp.ge.s32.totalorder %s14, 10
      %s21 = sphi 0, %s33
      %s22 = sphi 0, %s29
      %s23 = sphi 0, %s21
      %s24 = sphi 0, %s22
      %s25 = sphi 0, %s23
      %s26 = sphi 0, %s24
      %s36 = sphi 0, %s38
      %s39 = sphi 0, %s36
      %s40 = sphi 0, %s39
      %s56 = sphi 0, %s40
      %s64 = sphi 0, %s66
      %s67 = sphi 0, %s64
      %s68 = sphi 0, %s67
      %s84 = sphi 0, %s68
      %s92 = sphi 0, %s94
      %s95 = sphi 0, %s92
      %s96 = sphi 0, %s95
      %s112 = sphi 0, %s96
    $region4: #{tpu_custom_call.1} parent=1 // loop_header_branch
      %17 = sbr.rel (%p15) target = $region8
    $region5: #{tpu_custom_call.1} parent=1 // loop_body
      %s19 = ssub.s32 %s14, 1
      %s20 = ssub.s32 %s14, 2
      %s27 = sadd.s32 1, %s22
      %p28 = scmp.ge.s32.totalorder %s27, 2
      %s29 = scalar_select %p28, 0, %s27
      %s30 = sadd.s32 1, %s21
      %s31 = scalar_select %p28, %s30, %s21
      %p32 = scmp.ge.s32.totalorder %s31, 4
      %s33 = scalar_select %p32, 0, %s31
      %s34 = ssub.s32 %s21, %s33
      %p35 = scmp.eq.s32.totalorder %s34, 0
      %s37 = sadd.s32 %s36, 1
      %s38 = scalar_select %p35, %s36, %s37
      %p41 = pneg %p35
      %p42 = scmp.eq.s32.totalorder %s14, 7
      %p43 = por %p41, %p42
      %p44 = scmp.ne.s32.totalorder %s36, %s39
      %p45 = scmp.eq.s32.totalorder %s14, 0
      %p46 = por %p44, %p45
      %p47 = scmp.ne.s32.totalorder %s36, %s39
      %p48 = scmp.eq.s32.totalorder %s19, 7
      %p49 = por %p47, %p48
      %p50 = scmp.ne.s32.totalorder %s39, %s40
      %p51 = scmp.eq.s32.totalorder %s19, 0
      %p52 = por %p50, %p51
      %p53 = scmp.ne.s32.totalorder %s39, %s40
      %p54 = scmp.eq.s32.totalorder %s20, 7
      %p55 = por %p53, %p54
      %p57 = scmp.ne.s32.totalorder %s40, %s56
      %p58 = scmp.eq.s32.totalorder %s20, 0
      %p59 = por %p57, %p58
      %s60 = ssub.s32 %s22, %s29
      %s61 = ssub.s32 %s21, %s33
      %s62 = sor.u32 %s60, %s61
      %p63 = scmp.eq.s32.totalorder %s62, 0
      %s65 = sadd.s32 %s64, 1
      %s66 = scalar_select %p63, %s64, %s65
      %p69 = pneg %p63
      %p70 = scmp.eq.s32.totalorder %s14, 7
      %p71 = por %p69, %p70
      %p72 = scmp.ne.s32.totalorder %s64, %s67
      %p73 = scmp.eq.s32.totalorder %s14, 0
      %p74 = por %p72, %p73
      %p75 = scmp.ne.s32.totalorder %s64, %s67
      %p76 = scmp.eq.s32.totalorder %s19, 7
      %p77 = por %p75, %p76
      %p78 = scmp.ne.s32.totalorder %s67, %s68
      %p79 = scmp.eq.s32.totalorder %s19, 0
      %p80 = por %p78, %p79
      %p81 = scmp.ne.s32.totalorder %s67, %s68
      %p82 = scmp.eq.s32.totalorder %s20, 7
      %p83 = por %p81, %p82
      %p85 = scmp.ne.s32.totalorder %s68, %s84
      %p86 = scmp.eq.s32.totalorder %s20, 0
      %p87 = por %p85, %p86
      %s88 = ssub.s32 %s22, %s29
      %s89 = ssub.s32 %s21, %s33
      %s90 = sor.u32 %s88, %s89
      %p91 = scmp.eq.s32.totalorder %s90, 0
      %s93 = sadd.s32 %s92, 1
      %s94 = scalar_select %p91, %s92, %s93
      %p97 = pneg %p91
      %p98 = scmp.eq.s32.totalorder %s14, 7
      %p99 = por %p97, %p98
      %p100 = scmp.ne.s32.totalorder %s92, %s95
      %p101 = scmp.eq.s32.totalorder %s14, 0
      %p102 = por %p100, %p101
      %p103 = scmp.ne.s32.totalorder %s92, %s95
      %p104 = scmp.eq.s32.totalorder %s19, 7
      %p105 = por %p103, %p104
      %p106 = scmp.ne.s32.totalorder %s95, %s96
      %p107 = scmp.eq.s32.totalorder %s19, 0
      %p108 = por %p106, %p107
      %p109 = scmp.ne.s32.totalorder %s95, %s96
      %p110 = scmp.eq.s32.totalorder %s20, 7
      %p111 = por %p109, %p110
      %p113 = scmp.ne.s32.totalorder %s96, %s112
      %p114 = scmp.eq.s32.totalorder %s20, 0
      %p115 = por %p113, %p114
      %p116 = scmp.le.s32.totalorder 1, %s14
      %p117 = scmp.lt.s32.totalorder %s14, 9
      %p118 = pnand %p116, %p117
      %p119 = pneg %p118
      // Predicated region
      $region9: #{tpu_custom_call.1} parent=5 // pred_check
        _
      $region10: #{tpu_custom_call.1} parent=5 // pred_check_branch
        %121 = sbr.rel (%p118) target = $region12
      $region11: #{tpu_custom_call.1} parent=5 // pred_region
        %s122 = ssub.s32 %s14, 1
      $region12: #{tpu_custom_call.1} parent=5 // pred_fallthru
        _
      %p123 = scmp.lt.s32.totalorder %s14, 8
      // Predicated region
      $region13: #{tpu_custom_call.1} parent=5 // pred_check
        %p124 = pneg %p123
      $region14: #{tpu_custom_call.1} parent=5 // pred_check_branch
        %126 = sbr.rel (%p124) target = $region16
      $region15: #{tpu_custom_call.1} parent=5 // pred_region
        // Predicated region
        $region17: #{tpu_custom_call.1} parent=15 // pred_check
          %p127 = pneg %p46
        $region18: #{tpu_custom_call.1} parent=15 // pred_check_branch
          %129 = sbr.rel (%p127) target = $region20
        $region19: #{tpu_custom_call.1} parent=15 // pred_region
          %s130 = sand.u32 %s36, 1
          %s131 = sand.u32 %s36, 1
          %s132 = smul.addr %s131, 48
          %s133 = scalar_lea.vmem [#allocation2], %s132
          %s134 = smul.u32 2, %s21
          %s135 = smul.addr %s134, 8
          %s136 = scalar_lea.vmem %s0, %s135
          // Predicated region
          $region21: #{tpu_custom_call.1} parent=19 // pred_check
            _
          $region22: #{tpu_custom_call.1} parent=19 // pred_check_branch
            %138 = sbr.rel (0) target = $region24
          $region23: #{tpu_custom_call.1} parent=19 // pred_region
            // Predicated region
            $region25: #{tpu_custom_call.1} parent=23 // pred_check
              _
            $region26: #{tpu_custom_call.1} parent=23 // pred_check_branch
              %140 = sbr.rel (0) target = $region28
            $region27: #{tpu_custom_call.1} parent=23 // pred_region
              // Predicated region
              $region40: #{tpu_custom_call.1} parent=27 // pred_check
                _
              $region41: #{tpu_custom_call.1} parent=27 // pred_check_branch
                %165 = sbr.rel (0) target = $region43
              $region42: #{tpu_custom_call.1} parent=27 // pred_region
                loop: start=0, step=1, limit=1
                $region44: #{tpu_custom_call.1} parent=42 // loop_pre_header
                  _
                $region45: #{tpu_custom_call.1} parent=42 // loop_header
                  %s167 = sphi 0, %s171
                  %p168 = scmp.ge.s32.totalorder %s167, 1
                  %s172 = sphi %s136, %s136
                  %s173 = sphi %s133, %s133
                $region46: #{tpu_custom_call.1} parent=42 // loop_header_branch
                  %170 = sbr.rel (%p168) target = $region50
                $region47: #{tpu_custom_call.1} parent=42 // loop_body
                  %v174 = vld [vmem:[%s172] sm:$0xff]
                  %175 = vst [vmem:[%s173] sm:$0xff] %v174
                  %v176 = vld [vmem:[%s172 + $0x8] sm:$0xff]
                  %177 = vst [vmem:[%s173 + $0x8] sm:$0xff] %v176
                  %v178 = vld [vmem:[%s172 + $0x40] sm:$0xff]
                  %179 = vst [vmem:[%s173 + $0x10] sm:$0xff] %v178
                  %v180 = vld [vmem:[%s172 + $0x48] sm:$0xff]
                  %181 = vst [vmem:[%s173 + $0x18] sm:$0xff] %v180
                  %v182 = vld [vmem:[%s172 + $0x80] sm:$0xff]
                  %183 = vst [vmem:[%s173 + $0x20] sm:$0xff] %v182
                  %v184 = vld [vmem:[%s172 + $0x88] sm:$0xff]
                  %185 = vst [vmem:[%s173 + $0x28] sm:$0xff] %v184
                $region48: #{tpu_custom_call.1} parent=42 // loop_footer
                  %s171 = sadd.s32 1, %s167
                $region49: #{tpu_custom_call.1} parent=42 // loop_footer_branch
                  %166 = sbr.rel target = $region45
                $region50: #{tpu_custom_call.1} parent=42 // loop_exit
                  _
              $region43: #{tpu_custom_call.1} parent=27 // pred_fallthru
                _
              // Predicated region
              $region51: #{tpu_custom_call.1} parent=27 // pred_check
                _
              $region52: #{tpu_custom_call.1} parent=27 // pred_check_branch
                %187 = sbr.rel target = $region54
              $region53: #{tpu_custom_call.1} parent=27 // pred_region
                _
              $region54: #{tpu_custom_call.1} parent=27 // pred_fallthru
                _
            $region28: #{tpu_custom_call.1} parent=23 // pred_fallthru
              _
            // Predicated region
            $region29: #{tpu_custom_call.1} parent=23 // pred_check
              _
            $region30: #{tpu_custom_call.1} parent=23 // pred_check_branch
              %142 = sbr.rel target = $region32
            $region31: #{tpu_custom_call.1} parent=23 // pred_region
              loop: start=0, step=1, limit=1
              $region33: #{tpu_custom_call.1} parent=31 // loop_pre_header
                _
              $region34: #{tpu_custom_call.1} parent=31 // loop_header
                %s145 = sphi 0, %s149
                %p146 = scmp.ge.s32.totalorder %s145, 1
                %s150 = sphi %s136, %s136
                %s151 = sphi %s133, %s133
              $region35: #{tpu_custom_call.1} parent=31 // loop_header_branch
                %148 = sbr.rel (%p146) target = $region39
              $region36: #{tpu_custom_call.1} parent=31 // loop_body
                %v152 = vld [vmem:[%s150] sm:$0xff]
                %153 = vst [vmem:[%s151] sm:$0xff] %v152
                %v154 = vld [vmem:[%s150 + $0x8] sm:$0xff]
                %155 = vst [vmem:[%s151 + $0x8] sm:$0xff] %v154
                %v156 = vld [vmem:[%s150 + $0x40] sm:$0xff]
                %157 = vst [vmem:[%s151 + $0x10] sm:$0xff] %v156
                %v158 = vld [vmem:[%s150 + $0x48] sm:$0xff]
                %159 = vst [vmem:[%s151 + $0x18] sm:$0xff] %v158
                %v160 = vld [vmem:[%s150 + $0x80] sm:$0xff]
                %161 = vst [vmem:[%s151 + $0x20] sm:$0xff] %v160
                %v162 = vld [vmem:[%s150 + $0x88] sm:$0xff]
                %163 = vst [vmem:[%s151 + $0x28] sm:$0xff] %v162
              $region37: #{tpu_custom_call.1} parent=31 // loop_footer
                %s149 = sadd.s32 1, %s145
              $region38: #{tpu_custom_call.1} parent=31 // loop_footer_branch
                %144 = sbr.rel target = $region34
              $region39: #{tpu_custom_call.1} parent=31 // loop_exit
                _
            $region32: #{tpu_custom_call.1} parent=23 // pred_fallthru
              _
          $region24: #{tpu_custom_call.1} parent=19 // pred_fallthru
            _
          %188 = vnop
        $region20: #{tpu_custom_call.1} parent=15 // pred_fallthru
          _
        // Predicated region
        $region55: #{tpu_custom_call.1} parent=15 // pred_check
          %p189 = pneg %p74
        $region56: #{tpu_custom_call.1} parent=15 // pred_check_branch
          %191 = sbr.rel (%p189) target = $region58
        $region57: #{tpu_custom_call.1} parent=15 // pred_region
          #allocation8 [shape = 'u32[6]{0}', space=smem, size = 0x18, scoped, tag = 'DMA stride descriptor']
          %s192 = sand.u32 %s64, 1
          %s193 = scalar_lea.sflag [#allocation4], %s192
          %s194 = sand.u32 %s64, 1
          %s195 = smul.addr %s194, 48
          %s196 = scalar_lea.vmem [#allocation3], %s195
          %s197 = smul.u32 2, %s21
          %s199 = ssub.s32 768, 768
          %200 = vsyncadd %s193, %s199
          %s201 = smul.addr %s22, 8
          %s202 = sadd.s32 %s197, %s201
          %s203 = smul.addr %s202, 128
          %s204 = scalar_lea.hbm %s1, %s203
          %s206 = sshll.u32 1, 14
          %s207 = sxor.u32 4294967295, %s206
          %s209 = sld [smem:[#allocation0]]
          %s210 = sadd.s32 2, %s209
          %s212 = sshll.u32 7, 26
          %s213 = sxor.u32 4294967295, %s212
          %s214 = sand.u32 0, %s213
          %s215 = sshll.u32 %s210, 26
          %s216 = sor.u32 %s214, %s215
          %s217 = sshll.u32 %s196, 4
          %s218 = int_to_ptr.vmem [resolvable:$true] %s217
          %224 = sst [smem:[#allocation8]] 2048
          %s225 = scalar_lea.smem [#allocation8], 1
          %226 = sst [smem:[%s225]] 256
          %s227 = scalar_lea.smem [#allocation8], 2
          %228 = sst [smem:[%s227]] 2
          %s229 = scalar_lea.smem [#allocation8], 3
          %230 = sst [smem:[%s229]] 128
          %s231 = scalar_lea.smem [#allocation8], 4
          %232 = sst [smem:[%s231]] 128
          %s233 = scalar_lea.smem [#allocation8], 5
          %234 = sst [smem:[%s233]] 8
          %236 = dma.general %s204, 768, %s218, %s193, [#allocation7], [#allocation8], %s216, 0
        $region58: #{tpu_custom_call.1} parent=15 // pred_fallthru
          _
      $region16: #{tpu_custom_call.1} parent=5 // pred_fallthru
        _
      %p237 = scmp.le.s32.totalorder 1, %s14
      %p238 = scmp.lt.s32.totalorder %s14, 9
      %p239 = pnand %p237, %p238
      %p240 = pneg %p239
      // Predicated region
      $region59: #{tpu_custom_call.1} parent=5 // pred_check
        _
      $region60: #{tpu_custom_call.1} parent=5 // pred_check_branch
        %242 = sbr.rel (%p239) target = $region62
      $region61: #{tpu_custom_call.1} parent=5 // pred_region
        %s243 = ssub.s32 %s14, 1
        %s244 = sand.u32 %s39, 1
        %s245 = sand.u32 %s39, 1
        %s246 = smul.addr %s245, 48
        %s247 = scalar_lea.vmem [#allocation2], %s246
        // Predicated region
        $region63: #{tpu_custom_call.1} parent=61 // pred_check
          %p248 = pneg %p52
        $region64: #{tpu_custom_call.1} parent=61 // pred_check_branch
          %250 = sbr.rel (%p248) target = $region66
        $region65: #{tpu_custom_call.1} parent=61 // pred_region
          _
        $region66: #{tpu_custom_call.1} parent=61 // pred_fallthru
          _
        %s251 = sand.u32 %s67, 1
        %s252 = scalar_lea.sflag [#allocation4], %s251
        %s253 = sand.u32 %s67, 1
        %s254 = smul.addr %s253, 48
        %s255 = scalar_lea.vmem [#allocation3], %s254
        // Predicated region
        $region67: #{tpu_custom_call.1} parent=61 // pred_check
          %p256 = pneg %p80
        $region68: #{tpu_custom_call.1} parent=61 // pred_check_branch
          %258 = sbr.rel (%p256) target = $region70
        $region69: #{tpu_custom_call.1} parent=61 // pred_region
          %259 = dma.done %s252, 768
        $region70: #{tpu_custom_call.1} parent=61 // pred_fallthru
          _
        %s260 = sand.u32 %s39, 1
        %s261 = sand.u32 %s39, 1
        %s262 = smul.addr %s261, 48
        %s263 = scalar_lea.vmem [#allocation2], %s262
        %p264 = pneg %p52
        %p265 = pneg %p49
        %s266 = sand.u32 %s67, 1
        %s267 = scalar_lea.sflag [#allocation4], %s266
        %s268 = sand.u32 %s67, 1
        %s269 = smul.addr %s268, 48
        %s270 = scalar_lea.vmem [#allocation3], %s269
        %p271 = pneg %p80
        %p272 = pneg %p77
        %p273 = pneg %p108
        %p274 = pneg %p105
        %s275 = sand.u32 %s95, 1
        %s276 = scalar_lea.sflag [#allocation5], %s275
        %s277 = sand.u32 %s95, 1
        %s278 = smul.addr %s277, 48
        %s279 = scalar_lea.vmem [#allocation6], %s278
        %s280 = smul.u32 2, %s23
        %s281 = smul.u32 2, %s23
        %s282 = smul.u32 2, %s23
        %v283 = vld [vmem:[%s247] sm:$0xff]
        %v284 = vld [vmem:[%s247 + $0x8] sm:$0xff]
        %v285 = vld [vmem:[%s255] sm:$0xff]
        %v286 = vld [vmem:[%s255 + $0x8] sm:$0xff]
        %288 = vset.pattern.permute.xlu0 0
        %289 = vperm.xlu0 %288, %v283
        %v290 = vpop.permute.xlu0 %289
        %293 = vset.pattern.permute.xlu0 0
        %294 = vperm.xlu0 %293, %v284
        %v295 = vpop.permute.xlu0 %294
        %v297 = vmul.f32 %v285, %v290
        %v298 = vmul.f32 %v286, %v295
        %299 = vst [vmem:[%s279] sm:$0xff] %v297
        %300 = vst [vmem:[%s279 + $0x18] sm:$0xff] %v298
        %s301 = scalar_lea.vmem %s247, 16 [#allocation2]
        %v302 = vld [vmem:[%s301] sm:$0xff]
        %v303 = vld [vmem:[%s301 + $0x8] sm:$0xff]
        %s304 = scalar_lea.vmem %s255, 16 [#allocation3]
        %v305 = vld [vmem:[%s304] sm:$0xff]
        %v306 = vld [vmem:[%s304 + $0x8] sm:$0xff]
        %308 = vset.pattern.permute.xlu0 0
        %309 = vperm.xlu0 %308, %v302
        %v310 = vpop.permute.xlu0 %309
        %313 = vset.pattern.permute.xlu0 0
        %314 = vperm.xlu0 %313, %v303
        %v315 = vpop.permute.xlu0 %314
        %v317 = vmul.f32 %v305, %v310
        %v318 = vmul.f32 %v306, %v315
        %319 = vst [vmem:[%s279 + $0x8] sm:$0xff] %v317
        %320 = vst [vmem:[%s279 + $0x20] sm:$0xff] %v318
        %s321 = scalar_lea.vmem %s247, 32 [#allocation2]
        %v322 = vld [vmem:[%s321] sm:$0xff]
        %v323 = vld [vmem:[%s321 + $0x8] sm:$0xff]
        %s324 = scalar_lea.vmem %s255, 32 [#allocation3]
        %v325 = vld [vmem:[%s324] sm:$0xff]
        %v326 = vld [vmem:[%s324 + $0x8] sm:$0xff]
        %328 = vset.pattern.permute.xlu0 0
        %329 = vperm.xlu0 %328, %v322
        %v330 = vpop.permute.xlu0 %329
        %333 = vset.pattern.permute.xlu0 0
        %334 = vperm.xlu0 %333, %v323
        %v335 = vpop.permute.xlu0 %334
        %v337 = vmul.f32 %v325, %v330
        %v338 = vmul.f32 %v326, %v335
        %339 = vst [vmem:[%s279 + $0x10] sm:$0xff] %v337
        %340 = vst [vmem:[%s279 + $0x28] sm:$0xff] %v338
        %s341 = sand.u32 %s95, 1
        %s342 = scalar_lea.sflag [#allocation5], %s341
        %s343 = sand.u32 %s95, 1
        %s344 = smul.addr %s343, 48
        %s345 = scalar_lea.vmem [#allocation6], %s344
        // Predicated region
        $region71: #{tpu_custom_call.1} parent=61 // pred_check
          %p346 = pneg %p105
        $region72: #{tpu_custom_call.1} parent=61 // pred_check_branch
          %348 = sbr.rel (%p346) target = $region74
        $region73: #{tpu_custom_call.1} parent=61 // pred_region
          %s349 = smul.u32 2, %s23
          %s351 = ssub.s32 768, 768
          %352 = vsyncadd %s342, %s351
          %s353 = smul.addr %s349, 3
          %s354 = smul.addr %s24, 24
          %s355 = sadd.s32 %s353, %s354
          %s356 = smul.addr %s355, 128
          %s357 = scalar_lea.hbm %s2, %s356
          %s358 = sshll.u32 %s345, 4
          %s359 = int_to_ptr.vmem [resolvable:$true] %s358
          %364 = dma.vmem_to_hbm [thread:$0]  %s359, 768, %s357, %s342, 384, 384, 24
        $region74: #{tpu_custom_call.1} parent=61 // pred_fallthru
          _
      $region62: #{tpu_custom_call.1} parent=5 // pred_fallthru
        _
      %p365 = scmp.le.s32.totalorder 2, %s14
      // Predicated region
      $region75: #{tpu_custom_call.1} parent=5 // pred_check
        %p366 = pneg %p365
      $region76: #{tpu_custom_call.1} parent=5 // pred_check_branch
        %368 = sbr.rel (%p366) target = $region78
      $region77: #{tpu_custom_call.1} parent=5 // pred_region
        %s369 = ssub.s32 %s14, 2
        // Predicated region
        $region79: #{tpu_custom_call.1} parent=77 // pred_check
          %p370 = pneg %p111
        $region80: #{tpu_custom_call.1} parent=77 // pred_check_branch
          %372 = sbr.rel (%p370) target = $region82
        $region81: #{tpu_custom_call.1} parent=77 // pred_region
          %s373 = sand.u32 %s96, 1
          %s374 = scalar_lea.sflag [#allocation5], %s373
          %s375 = sand.u32 %s96, 1
          %s376 = smul.addr %s375, 48
          %s377 = scalar_lea.vmem [#allocation6], %s376
          %378 = dma.done %s374, 768
        $region82: #{tpu_custom_call.1} parent=77 // pred_fallthru
          _
      $region78: #{tpu_custom_call.1} parent=5 // pred_fallthru
        _
    $region6: #{tpu_custom_call.1} parent=1 // loop_footer
      %s18 = sadd.s32 1, %s14
    $region7: #{tpu_custom_call.1} parent=1 // loop_footer_branch
      %13 = sbr.rel target = $region3
    $region8: #{tpu_custom_call.1} parent=1 // loop_exit
      _
    %379 = vsyncpa [#allocation4], 1
    %s380 = scalar_lea.sflag [#allocation4], 1
    %381 = vsyncpa %s380, 1
    %382 = vsyncpa [#allocation5], 1
    %s383 = scalar_lea.sflag [#allocation5], 1
    %384 = vsyncpa %s383, 1

</llo_original>
